<compile_context>
chip_gen: v6e
topology: v6e:2x2x1
jax: 0.10.0
libtpu: 0.0.40
codegen_flags: <defaults>
</compile_context>

<pallas_src>
import functools
import math

import jax
import jax.numpy as jnp
from jax import lax
from jax.experimental import pallas as pl
from jax.experimental.pallas import tpu as pltpu


def _bytes(shape, dtype):
    return math.prod(shape) * jnp.dtype(dtype).itemsize


def _vmem_limit_bytes(block_bytes, scratch_bytes):
    """Derive vmem_limit_bytes from real block sizes instead of a hard-coded cap."""
    try:
        physical = pltpu.get_tpu_info().vmem_capacity_bytes
    except Exception:
        physical = 64 * 1024 * 1024          # conservative (v7x per-TC VMEM)
    est = 2 * block_bytes + scratch_bytes + (4 << 20)   # x2 double-buffering + Mosaic scratch
    return int(max(16 << 20, min(physical - (8 << 20), est)))


# --------------------------------------------------------------------------
# Kernel 1: LayerNorm + fused Q/K/V projection.
# --------------------------------------------------------------------------
def _ln_qkv_kernel(x_ref, gamma_ref, beta_ref, wqkv_ref,
                   q_ref, k_ref, v_ref, *, inner_dim, eps):
    # x block: (1, tn, D) bf16 -> LayerNorm in f32 (PyTorch nn.LayerNorm semantics).
    x = x_ref[0].astype(jnp.float32)                                 # (tn, D)
    mean = jnp.mean(x, axis=-1, keepdims=True)
    var = jnp.mean(jnp.square(x - mean), axis=-1, keepdims=True)
    xn = (x - mean) * lax.rsqrt(var + eps)
    xn = xn * gamma_ref[...] + beta_ref[...]                         # (tn, D) f32

    # ONE lane-dense matmul against the packed (D, 3*inner) weight slab
    # (scale already folded into the Q columns on the host).
    qkv = jnp.dot(xn.astype(jnp.bfloat16), wqkv_ref[...],
                  preferred_element_type=jnp.float32)                # (tn, 3*inner)

    q_ref[0] = qkv[:, 0:inner_dim].astype(q_ref.dtype)
    k_ref[0] = qkv[:, inner_dim:2 * inner_dim].astype(k_ref.dtype)
    v_ref[0] = qkv[:, 2 * inner_dim:3 * inner_dim].astype(v_ref.dtype)


# --------------------------------------------------------------------------
# Kernel 2: flash attention (online softmax over key tiles) + output projection.
# --------------------------------------------------------------------------
def _flash_attn_kernel(q_ref, k_ref, v_ref, wo_ref, bo_ref, out_ref,
                       m_sc, l_sc, acc_sc, *, num_heads, head_dim):
    H, Dh = num_heads, head_dim
    tq = q_ref.shape[1]
    tk = k_ref.shape[1]
    ki = pl.program_id(2)

    @pl.when(ki == 0)
    def _():
        m_sc[...] = jnp.full_like(m_sc, -jnp.inf)
        l_sc[...] = jnp.zeros_like(l_sc)
        acc_sc[...] = jnp.zeros_like(acc_sc)

    def to_heads(ref, t):          # (1, t, H*Dh) bf16 -> (H, t, Dh) bf16
        return ref[0].reshape(t, H, Dh).transpose(1, 0, 2)

    q = to_heads(q_ref, tq)        # scale already folded into the Q weights
    k = to_heads(k_ref, tk)
    v = to_heads(v_ref, tk)

    # Head-batched score block only: (H, tq, tk) f32 -- (H, N, N) never exists.
    s = jnp.einsum('hqd,hkd->hqk', q, k,
                   preferred_element_type=jnp.float32)

    m_prev = m_sc[...]                                               # (H, tq, 1)
    m_new = jnp.maximum(m_prev, jnp.max(s, axis=-1, keepdims=True))
    alpha = jnp.exp(m_prev - m_new)
    p = jnp.exp(s - m_new)
    l_sc[...] = alpha * l_sc[...] + jnp.sum(p, axis=-1, keepdims=True)
    acc_sc[...] = alpha * acc_sc[...] + jnp.einsum(
        'hqk,hkd->hqd', p.astype(jnp.bfloat16), v,
        preferred_element_type=jnp.float32)                          # (H, tq, Dh)
    m_sc[...] = m_new
    # Dropout with p=0.0 / eval mode is the identity.

    @pl.when(ki == pl.num_programs(2) - 1)
    def _():
        o = acc_sc[...] * pl.reciprocal(l_sc[...], approx=True)      # (H, tq, Dh)
        o_cat = o.transpose(1, 0, 2).reshape(tq, H * Dh)             # (tq, inner)
        out = jnp.dot(o_cat.astype(jnp.bfloat16), wo_ref[...],
                      preferred_element_type=jnp.float32) + bo_ref[...]
        out_ref[0] = out.astype(out_ref.dtype)


# --------------------------------------------------------------------------
# Wrapper.
# --------------------------------------------------------------------------
def self_attention_pallas(x, params, *, num_heads, head_dim, eps=1e-5,
                          seq_tile=128, mxu_dtype=jnp.bfloat16):
    B, N, D = x.shape
    H, Dh = num_heads, head_dim
    inner = H * Dh

    tile = min(N, seq_tile)
    assert N % tile == 0, "sequence length must be a multiple of the tile size"
    nq = nk = N // tile

    gamma = params["ln_gamma"].reshape(1, D).astype(jnp.float32)
    beta = params["ln_beta"].reshape(1, D).astype(jnp.float32)
    bo = params["bo"].reshape(1, D).astype(jnp.float32)

    # Host-side weight packing.  PyTorch Linear: y = x @ W.T, W is (out, in).
    # Pack Q|K|V as one (D, 3*inner) slab; columns keep PyTorch's (h d)
    # head-major order.  Fold head_dim**-0.5 into the Q columns.
    scale = head_dim ** (-0.5)
    wqkv = jnp.concatenate(
        [params["wq"].T * scale, params["wk"].T, params["wv"].T],
        axis=1).astype(mxu_dtype)                                    # (D, 3*inner)
    wo = params["wo"].T.astype(mxu_dtype)                            # (inner, D)

    x_bf16 = x.astype(jnp.bfloat16)

    # ---- Kernel 1: LayerNorm + fused QKV projection ----
    qkv_block_bytes = (
        _bytes((1, tile, D), jnp.bfloat16)
        + 2 * _bytes((1, D), jnp.float32)
        + _bytes((D, 3 * inner), mxu_dtype)
        + 3 * _bytes((1, tile, inner), jnp.bfloat16))
    ln_qkv = pl.pallas_call(
        functools.partial(_ln_qkv_kernel, inner_dim=inner, eps=eps),
        out_shape=tuple(jax.ShapeDtypeStruct((B, N, inner), jnp.bfloat16)
                        for _ in range(3)),
        grid_spec=pltpu.PrefetchScalarGridSpec(
            num_scalar_prefetch=0,
            grid=(B, N // tile),
            in_specs=[
                pl.BlockSpec((1, tile, D), lambda b, n: (b, n, 0)),      # x
                pl.BlockSpec((1, D), lambda b, n: (0, 0)),               # ln gamma
                pl.BlockSpec((1, D), lambda b, n: (0, 0)),               # ln beta
                pl.BlockSpec((D, 3 * inner), lambda b, n: (0, 0)),       # Wqkv
            ],
            out_specs=tuple(pl.BlockSpec((1, tile, inner), lambda b, n: (b, n, 0))
                            for _ in range(3)),
        ),
        compiler_params=pltpu.CompilerParams(
            dimension_semantics=("parallel", "parallel"),
            vmem_limit_bytes=_vmem_limit_bytes(qkv_block_bytes, 0),
        ),
    )
    q, k, v = ln_qkv(x_bf16, gamma, beta, wqkv)

    # ---- Kernel 2: flash attention + output projection ----
    attn_block_bytes = (
        3 * _bytes((1, tile, inner), jnp.bfloat16)
        + _bytes((inner, D), mxu_dtype)
        + _bytes((1, D), jnp.float32)
        + _bytes((1, tile, D), x.dtype))
    attn_scratch_bytes = (2 * _bytes((H, tile, 1), jnp.float32)
                          + _bytes((H, tile, Dh), jnp.float32))
    attn = pl.pallas_call(
        functools.partial(_flash_attn_kernel, num_heads=H, head_dim=Dh),
        out_shape=jax.ShapeDtypeStruct((B, N, D), x.dtype),
        grid_spec=pltpu.PrefetchScalarGridSpec(
            num_scalar_prefetch=0,
            grid=(B, nq, nk),
            in_specs=[
                pl.BlockSpec((1, tile, inner), lambda b, qi, ki: (b, qi, 0)),  # q
                pl.BlockSpec((1, tile, inner), lambda b, qi, ki: (b, ki, 0)),  # k
                pl.BlockSpec((1, tile, inner), lambda b, qi, ki: (b, ki, 0)),  # v
                pl.BlockSpec((inner, D), lambda b, qi, ki: (0, 0)),            # Wo
                pl.BlockSpec((1, D), lambda b, qi, ki: (0, 0)),                # bo
            ],
            out_specs=pl.BlockSpec((1, tile, D), lambda b, qi, ki: (b, qi, 0)),
            scratch_shapes=[
                pltpu.VMEM((H, tile, 1), jnp.float32),    # running max
                pltpu.VMEM((H, tile, 1), jnp.float32),    # running sum
                pltpu.VMEM((H, tile, Dh), jnp.float32),   # output accumulator
            ],
        ),
        compiler_params=pltpu.CompilerParams(
            dimension_semantics=("parallel", "parallel", "arbitrary"),
            vmem_limit_bytes=_vmem_limit_bytes(attn_block_bytes, attn_scratch_bytes),
        ),
    )
    return attn(q, k, v, wo, bo)


def self_attention_ref(x, params, *, num_heads, head_dim, eps=1e-5):
    """Pure-JAX (f32) reference matching the PyTorch module semantics."""
    B, N, D = x.shape
    mean = jnp.mean(x, -1, keepdims=True)
    var = jnp.mean((x - mean) ** 2, -1, keepdims=True)
    xn = (x - mean) / jnp.sqrt(var + eps) * params["ln_gamma"] + params["ln_beta"]

    q = xn @ params["wq"].T
    k = xn @ params["wk"].T
    v = xn @ params["wv"].T

    def split(t):  # (B, N, H*Dh) -> (B, H, N, Dh)
        return t.reshape(B, N, num_heads, head_dim).transpose(0, 2, 1, 3)

    qh, kh, vh = split(q), split(k), split(v)
    sim = jnp.einsum("bhid,bhjd->bhij", qh, kh) * head_dim ** (-0.5)
    attn = jax.nn.softmax(sim, axis=-1)
    o = jnp.einsum("bhij,bhjd->bhid", attn, vh)
    o = o.transpose(0, 2, 1, 3).reshape(B, N, num_heads * head_dim)
    return o @ params["wo"].T + params["bo"]


if __name__ == "__main__":
    # Small, module-consistent shapes.
    B, N = 2, 8
    x_dim, num_heads, head_dim = 32, 4, 8
    inner = num_heads * head_dim

    key = jax.random.PRNGKey(0)
    ks = jax.random.split(key, 8)
    params = {
        "ln_gamma": jax.random.normal(ks[0], (x_dim,), jnp.float32) * 0.1 + 1.0,
        "ln_beta":  jax.random.normal(ks[1], (x_dim,), jnp.float32) * 0.1,
        "wq": jax.random.normal(ks[2], (inner, x_dim), jnp.float32) * 0.1,
        "wk": jax.random.normal(ks[3], (inner, x_dim), jnp.float32) * 0.1,
        "wv": jax.random.normal(ks[4], (inner, x_dim), jnp.float32) * 0.1,
        "wo": jax.random.normal(ks[5], (x_dim, inner), jnp.float32) * 0.1,
        "bo": jax.random.normal(ks[6], (x_dim,), jnp.float32) * 0.1,
    }
    x = jax.random.normal(ks[7], (B, N, x_dim), jnp.float32)

    out = self_attention_pallas(x, params, num_heads=num_heads, head_dim=head_dim)
    out = jax.block_until_ready(out)

    ref = self_attention_ref(x, params, num_heads=num_heads, head_dim=head_dim)
    assert out.shape == (B, N, x_dim)
    # bf16 MXU operands / bf16 Q,K,V staging (f32 accumulate) -> looser tolerance.
    assert jnp.allclose(out, ref, atol=3e-2, rtol=3e-2), "mismatch vs reference"

    print("KERNEL_OK")
</pallas_src>

<mosaic_0001>
module attributes {stable_mosaic.version = 11 : i64} {
  func.func @_ln_qkv_kernel(%arg0: i32, %arg1: i32, %arg2: memref<1x8x32xbf16, #tpu.memory_space<vmem>>, %arg3: memref<1x32xf32, #tpu.memory_space<vmem>>, %arg4: memref<1x32xf32, #tpu.memory_space<vmem>>, %arg5: memref<32x96xbf16, #tpu.memory_space<vmem>>, %arg6: memref<1x8x32xbf16, #tpu.memory_space<vmem>>, %arg7: memref<1x8x32xbf16, #tpu.memory_space<vmem>>, %arg8: memref<1x8x32xbf16, #tpu.memory_space<vmem>>) attributes {dimension_semantics = [#tpu.dimension_semantics<parallel>, #tpu.dimension_semantics<parallel>], iteration_bounds = array<i64: 2, 1>, scalar_prefetch = 0 : i64, scratch_operands = 0 : i64, tpu.core_type = #tpu.core_type<tc>, window_params = [{transform_indices = @transform_0, window_bounds = array<i64: 1, 8, 32>}, {pipeline_mode = #tpu.pipeline_mode<synchronous>, transform_indices = @transform_1, window_bounds = array<i64: 1, 32>}, {pipeline_mode = #tpu.pipeline_mode<synchronous>, transform_indices = @transform_2, window_bounds = array<i64: 1, 32>}, {pipeline_mode = #tpu.pipeline_mode<synchronous>, transform_indices = @transform_3, window_bounds = array<i64: 32, 96>}, {transform_indices = @transform_4, window_bounds = array<i64: 1, 8, 32>}, {transform_indices = @transform_5, window_bounds = array<i64: 1, 8, 32>}, {transform_indices = @transform_6, window_bounds = array<i64: 1, 8, 32>}]} {
    %c0 = arith.constant 0 : index
    %c0_0 = arith.constant 0 : index
    %c0_1 = arith.constant 0 : index
    %0 = vector.load %arg2[%c0, %c0_0, %c0_1] : memref<1x8x32xbf16, #tpu.memory_space<vmem>>, vector<1x8x32xbf16>
    %1 = vector.shape_cast %0 : vector<1x8x32xbf16> to vector<8x32xbf16>
    %2 = arith.extf %1 : vector<8x32xbf16> to vector<8x32xf32>
    %cst = arith.constant dense<0.000000e+00> : vector<8xf32>
    %3 = vector.multi_reduction <add>, %2, %cst [1] : vector<8x32xf32> to vector<8xf32>
    %4 = vector.shape_cast %3 : vector<8xf32> to vector<8x1xf32>
    %cst_2 = arith.constant 3.200000e+01 : f32
    %5 = vector.broadcast %cst_2 : f32 to vector<8x1xf32>
    %6 = arith.divf %4, %5 : vector<8x1xf32>
    %7 = vector.broadcast %6 : vector<8x1xf32> to vector<8x32xf32>
    %8 = arith.subf %2, %7 : vector<8x32xf32>
    %9 = arith.mulf %8, %8 : vector<8x32xf32>
    %cst_3 = arith.constant dense<0.000000e+00> : vector<8xf32>
    %10 = vector.multi_reduction <add>, %9, %cst_3 [1] : vector<8x32xf32> to vector<8xf32>
    %11 = vector.shape_cast %10 : vector<8xf32> to vector<8x1xf32>
    %cst_4 = arith.constant 3.200000e+01 : f32
    %12 = vector.broadcast %cst_4 : f32 to vector<8x1xf32>
    %13 = arith.divf %11, %12 : vector<8x1xf32>
    %14 = vector.broadcast %6 : vector<8x1xf32> to vector<8x32xf32>
    %15 = arith.subf %2, %14 : vector<8x32xf32>
    %cst_5 = arith.constant 9.99999974E-6 : f32
    %16 = vector.broadcast %cst_5 : f32 to vector<8x1xf32>
    %17 = arith.addf %13, %16 : vector<8x1xf32>
    %18 = math.rsqrt %17 : vector<8x1xf32>
    %19 = vector.broadcast %18 : vector<8x1xf32> to vector<8x32xf32>
    %20 = arith.mulf %15, %19 : vector<8x32xf32>
    %c0_6 = arith.constant 0 : index
    %c0_7 = arith.constant 0 : index
    %21 = vector.load %arg3[%c0_6, %c0_7] : memref<1x32xf32, #tpu.memory_space<vmem>>, vector<1x32xf32>
    %22 = vector.broadcast %21 : vector<1x32xf32> to vector<8x32xf32>
    %23 = arith.mulf %20, %22 : vector<8x32xf32>
    %c0_8 = arith.constant 0 : index
    %c0_9 = arith.constant 0 : index
    %24 = vector.load %arg4[%c0_8, %c0_9] : memref<1x32xf32, #tpu.memory_space<vmem>>, vector<1x32xf32>
    %25 = vector.broadcast %24 : vector<1x32xf32> to vector<8x32xf32>
    %26 = arith.addf %23, %25 : vector<8x32xf32>
    %27 = arith.truncf %26 : vector<8x32xf32> to vector<8x32xbf16>
    %c0_10 = arith.constant 0 : index
    %c0_11 = arith.constant 0 : index
    %28 = vector.load %arg5[%c0_10, %c0_11] : memref<32x96xbf16, #tpu.memory_space<vmem>>, vector<32x96xbf16>
    %cst_12 = arith.constant dense<0.000000e+00> : vector<8x96xf32>
    %29 = tpu.matmul %27, %28, %cst_12 {dimension_numbers = #tpu.dot_dimension_numbers<[1], [0], [0], [1], [0, 0, 1, 1], [], []>} : vector<8x32xbf16>, vector<32x96xbf16>, vector<8x96xf32> -> vector<8x96xf32>
    %30 = vector.extract_strided_slice %29 {offsets = [0, 0], sizes = [8, 32], strides = [1, 1]} : vector<8x96xf32> to vector<8x32xf32>
    %31 = arith.truncf %30 : vector<8x32xf32> to vector<8x32xbf16>
    %c0_13 = arith.constant 0 : index
    %c0_14 = arith.constant 0 : index
    %c0_15 = arith.constant 0 : index
    %32 = vector.load %arg6[%c0_13, %c0_14, %c0_15] : memref<1x8x32xbf16, #tpu.memory_space<vmem>>, vector<1x8x32xbf16>
    %33 = vector.shape_cast %32 : vector<1x8x32xbf16> to vector<8x32xbf16>
    %34 = vector.shape_cast %31 : vector<8x32xbf16> to vector<1x8x32xbf16>
    tpu.vector_store %arg6[%c0_13, %c0_14, %c0_15], %34 {strides = array<i32>} : memref<1x8x32xbf16, #tpu.memory_space<vmem>>, vector<1x8x32xbf16>,
    %35 = vector.extract_strided_slice %29 {offsets = [0, 32], sizes = [8, 32], strides = [1, 1]} : vector<8x96xf32> to vector<8x32xf32>
    %36 = arith.truncf %35 : vector<8x32xf32> to vector<8x32xbf16>
    %c0_16 = arith.constant 0 : index
    %c0_17 = arith.constant 0 : index
    %c0_18 = arith.constant 0 : index
    %37 = vector.load %arg7[%c0_16, %c0_17, %c0_18] : memref<1x8x32xbf16, #tpu.memory_space<vmem>>, vector<1x8x32xbf16>
    %38 = vector.shape_cast %37 : vector<1x8x32xbf16> to vector<8x32xbf16>
    %39 = vector.shape_cast %36 : vector<8x32xbf16> to vector<1x8x32xbf16>
    tpu.vector_store %arg7[%c0_16, %c0_17, %c0_18], %39 {strides = array<i32>} : memref<1x8x32xbf16, #tpu.memory_space<vmem>>, vector<1x8x32xbf16>,
    %40 = vector.extract_strided_slice %29 {offsets = [0, 64], sizes = [8, 32], strides = [1, 1]} : vector<8x96xf32> to vector<8x32xf32>
    %41 = arith.truncf %40 : vector<8x32xf32> to vector<8x32xbf16>
    %c0_19 = arith.constant 0 : index
    %c0_20 = arith.constant 0 : index
    %c0_21 = arith.constant 0 : index
    %42 = vector.load %arg8[%c0_19, %c0_20, %c0_21] : memref<1x8x32xbf16, #tpu.memory_space<vmem>>, vector<1x8x32xbf16>
    %43 = vector.shape_cast %42 : vector<1x8x32xbf16> to vector<8x32xbf16>
    %44 = vector.shape_cast %41 : vector<8x32xbf16> to vector<1x8x32xbf16>
    tpu.vector_store %arg8[%c0_19, %c0_20, %c0_21], %44 {strides = array<i32>} : memref<1x8x32xbf16, #tpu.memory_space<vmem>>, vector<1x8x32xbf16>,
    return
  }
  func.func @transform_0(%arg0: i32, %arg1: i32) -> (i32, i32, i32) {
    %c0_i32 = arith.constant 0 : i32
    %c0_i32_0 = arith.constant 0 : i32
    return %arg0, %arg1, %c0_i32 : i32, i32, i32
  }
  func.func @transform_1(%arg0: i32, %arg1: i32) -> (i32, i32) {
    %c0_i32 = arith.constant 0 : i32
    %c0_i32_0 = arith.constant 0 : i32
    %c0_i32_1 = arith.constant 0 : i32
    return %c0_i32, %c0_i32_0 : i32, i32
  }
  func.func @transform_2(%arg0: i32, %arg1: i32) -> (i32, i32) {
    %c0_i32 = arith.constant 0 : i32
    %c0_i32_0 = arith.constant 0 : i32
    %c0_i32_1 = arith.constant 0 : i32
    return %c0_i32, %c0_i32_0 : i32, i32
  }
  func.func @transform_3(%arg0: i32, %arg1: i32) -> (i32, i32) {
    %c0_i32 = arith.constant 0 : i32
    %c0_i32_0 = arith.constant 0 : i32
    %c0_i32_1 = arith.constant 0 : i32
    return %c0_i32, %c0_i32_0 : i32, i32
  }
  func.func @transform_4(%arg0: i32, %arg1: i32) -> (i32, i32, i32) {
    %c0_i32 = arith.constant 0 : i32
    %c0_i32_0 = arith.constant 0 : i32
    return %arg0, %arg1, %c0_i32 : i32, i32, i32
  }
  func.func @transform_5(%arg0: i32, %arg1: i32) -> (i32, i32, i32) {
    %c0_i32 = arith.constant 0 : i32
    %c0_i32_0 = arith.constant 0 : i32
    return %arg0, %arg1, %c0_i32 : i32, i32, i32
  }
  func.func @transform_6(%arg0: i32, %arg1: i32) -> (i32, i32, i32) {
    %c0_i32 = arith.constant 0 : i32
    %c0_i32_0 = arith.constant 0 : i32
    return %arg0, %arg1, %c0_i32 : i32, i32, i32
  }
}

</mosaic_0001>

<llo_original>
// kernel: tpu_custom_call.1
$region0: #{tpu_custom_call.1}
  #allocation0 [shape = 'u32[]', space=smem, size = 0x4, offset = 0x4, fixed_abs, tag = 'smem constant byte address 0x4 - core index']
  #allocation1 [shape = 'u32[144,128]{1,0:T(1,128)}', space=vmem, size = 0x12000, scoped, tag = 'internal scratch']
  %s0 = inlined_call_operand.hbm [shape: bf16[2,8,32], index: 0, kind: input, shape index: {}]
  %s1 = inlined_call_operand.vmem [shape: f32[1,32], index: 1, kind: input, shape index: {}]
  %s2 = inlined_call_operand.vmem [shape: f32[1,32], index: 2, kind: input, shape index: {}]
  %s3 = inlined_call_operand.hbm [shape: bf16[32,96], index: 3, kind: input, shape index: {}]
  %s4 = inlined_call_operand.hbm [shape: bf16[2,8,32], index: 4, kind: output, shape index: {0}]
  %s5 = inlined_call_operand.hbm [shape: bf16[2,8,32], index: 5, kind: output, shape index: {1}]
  %s6 = inlined_call_operand.hbm [shape: bf16[2,8,32], index: 6, kind: output, shape index: {2}]
  %7 = xla_tuple %s4, %s5, %s6
  %s8 = sld [smem:[#allocation0]]
  $region73: #{tpu_custom_call.1} parent=0
    _
  %s10 = ssub.s32 1, %s8
  %s11 = scalar_select 0, %s10, %s8
  $region1: #{tpu_custom_call.1} parent=0
    #allocation2 [shape = 'u8[4096]{0}', space=vmem, size = 0x1000, scoped, tag = 'input window, operand 0']
    #allocation3 [shape = 's32[2]{0}', space=sflag, size = 0x8, scoped, tag = 'scoped memory for tpu_custom_call.1']
    #allocation4 [shape = 's32[2]{0}', space=sflag, size = 0x8, scoped, tag = 'scoped memory for tpu_custom_call.1']
    #allocation5 [shape = 'u8[8192]{0}', space=vmem, size = 0x2000, scoped, tag = 'input window, operand 3, single buffered']
    #allocation6 [shape = 's32[1]{0}', space=sflag, size = 0x4, scoped, tag = 'scoped memory for tpu_custom_call.1']
    #allocation7 [shape = 'u8[4096]{0}', space=vmem, size = 0x1000, scoped, tag = 'output window, operand 0']
    #allocation8 [shape = 'u8[4096]{0}', space=vmem, size = 0x1000, scoped, tag = 'output window, operand 1']
    #allocation9 [shape = 's32[2]{0}', space=sflag, size = 0x8, scoped, tag = 'scoped memory for tpu_custom_call.1']
    #allocation10 [shape = 'u8[4096]{0}', space=vmem, size = 0x1000, scoped, tag = 'output window, operand 2']
    %12 = vsyncpa [#allocation3], 0
    %s13 = scalar_lea.sflag [#allocation3], 1
    %14 = vsyncpa %s13, 0
    %15 = vsyncpa [#allocation6], 0
    %16 = vsyncpa [#allocation4], 0
    %s17 = scalar_lea.sflag [#allocation4], 1
    %18 = vsyncpa %s17, 0
    %19 = vsyncpa [#allocation9], 0
    %s20 = scalar_lea.sflag [#allocation9], 1
    %21 = vsyncpa %s20, 0
    loop: start=0, step=1, limit=4
    $region2: #{tpu_custom_call.1} parent=1 // loop_pre_header
      _
    $region3: #{tpu_custom_call.1} parent=1 // loop_header
      %s23 = sphi 0, %s27
      %p24 = scmp.ge.s32.totalorder %s23, 4
      %s30 = sphi 0, %s42
      %s31 = sphi 0, %s38
      %s32 = sphi 0, %s30
      %s33 = sphi 0, %s31
      %s34 = sphi 0, %s32
      %s35 = sphi 0, %s33
      %s47 = sphi 0, %s49
      %s50 = sphi 0, %s47
      %s51 = sphi 0, %s50
      %s67 = sphi 0, %s51
      %s71 = sphi 0, %s71
      %s73 = sphi 0, %s71
      %s74 = sphi 0, %s73
      %s88 = sphi 0, %s74
      %s92 = sphi 0, %s92
      %s94 = sphi 0, %s92
      %s95 = sphi 0, %s94
      %s109 = sphi 0, %s95
      %s113 = sphi 0, %s113
      %s115 = sphi 0, %s113
      %s116 = sphi 0, %s115
      %s130 = sphi 0, %s116
      %s138 = sphi 0, %s140
      %s141 = sphi 0, %s138
      %s142 = sphi 0, %s141
      %s158 = sphi 0, %s142
      %s166 = sphi 0, %s168
      %s169 = sphi 0, %s166
      %s170 = sphi 0, %s169
      %s186 = sphi 0, %s170
      %s194 = sphi 0, %s196
      %s197 = sphi 0, %s194
      %s198 = sphi 0, %s197
      %s214 = sphi 0, %s198
    $region4: #{tpu_custom_call.1} parent=1 // loop_header_branch
      %26 = sbr.rel (%p24) target = $region8
    $region5: #{tpu_custom_call.1} parent=1 // loop_body
      %s28 = ssub.s32 %s23, 1
      %s29 = ssub.s32 %s23, 2
      %s36 = sadd.s32 1, %s31
      %p37 = scmp.ge.s32.totalorder %s36, 1
      %s38 = scalar_select %p37, 0, %s36
      %s39 = sadd.s32 1, %s30
      %s40 = scalar_select %p37, %s39, %s30
      %p41 = scmp.ge.s32.totalorder %s40, 2
      %s42 = scalar_select %p41, 0, %s40
      %s43 = ssub.s32 %s30, %s42
      %s44 = ssub.s32 %s31, %s38
      %s45 = sor.u32 %s43, %s44
      %p46 = scmp.eq.s32.totalorder %s45, 0
      %s48 = sadd.s32 %s47, 1
      %s49 = scalar_select %p46, %s47, %s48
      %p52 = pneg %p46
      %p53 = scmp.eq.s32.totalorder %s23, 1
      %p54 = por %p52, %p53
      %p55 = scmp.ne.s32.totalorder %s47, %s50
      %p56 = scmp.eq.s32.totalorder %s23, 0
      %p57 = por %p55, %p56
      %p58 = scmp.ne.s32.totalorder %s47, %s50
      %p59 = scmp.eq.s32.totalorder %s28, 1
      %p60 = por %p58, %p59
      %p61 = scmp.ne.s32.totalorder %s50, %s51
      %p62 = scmp.eq.s32.totalorder %s28, 0
      %p63 = por %p61, %p62
      %p64 = scmp.ne.s32.totalorder %s50, %s51
      %p65 = scmp.eq.s32.totalorder %s29, 1
      %p66 = por %p64, %p65
      %p68 = scmp.ne.s32.totalorder %s51, %s67
      %p69 = scmp.eq.s32.totalorder %s29, 0
      %p70 = por %p68, %p69
      %s72 = sadd.s32 %s71, 1
      %p75 = scmp.eq.s32.totalorder %s23, 1
      %p76 = scmp.ne.s32.totalorder %s71, %s73
      %p77 = scmp.eq.s32.totalorder %s23, 0
      %p78 = por %p76, %p77
      %p79 = scmp.ne.s32.totalorder %s71, %s73
      %p80 = scmp.eq.s32.totalorder %s28, 1
      %p81 = por %p79, %p80
      %p82 = scmp.ne.s32.totalorder %s73, %s74
      %p83 = scmp.eq.s32.totalorder %s28, 0
      %p84 = por %p82, %p83
      %p85 = scmp.ne.s32.totalorder %s73, %s74
      %p86 = scmp.eq.s32.totalorder %s29, 1
      %p87 = por %p85, %p86
      %p89 = scmp.ne.s32.totalorder %s74, %s88
      %p90 = scmp.eq.s32.totalorder %s29, 0
      %p91 = por %p89, %p90
      %s93 = sadd.s32 %s92, 1
      %p96 = scmp.eq.s32.totalorder %s23, 1
      %p97 = scmp.ne.s32.totalorder %s92, %s94
      %p98 = scmp.eq.s32.totalorder %s23, 0
      %p99 = por %p97, %p98
      %p100 = scmp.ne.s32.totalorder %s92, %s94
      %p101 = scmp.eq.s32.totalorder %s28, 1
      %p102 = por %p100, %p101
      %p103 = scmp.ne.s32.totalorder %s94, %s95
      %p104 = scmp.eq.s32.totalorder %s28, 0
      %p105 = por %p103, %p104
      %p106 = scmp.ne.s32.totalorder %s94, %s95
      %p107 = scmp.eq.s32.totalorder %s29, 1
      %p108 = por %p106, %p107
      %p110 = scmp.ne.s32.totalorder %s95, %s109
      %p111 = scmp.eq.s32.totalorder %s29, 0
      %p112 = por %p110, %p111
      %s114 = sadd.s32 %s113, 1
      %p117 = scmp.eq.s32.totalorder %s23, 1
      %p118 = scmp.ne.s32.totalorder %s113, %s115
      %p119 = scmp.eq.s32.totalorder %s23, 0
      %p120 = por %p118, %p119
      %p121 = scmp.ne.s32.totalorder %s113, %s115
      %p122 = scmp.eq.s32.totalorder %s28, 1
      %p123 = por %p121, %p122
      %p124 = scmp.ne.s32.totalorder %s115, %s116
      %p125 = scmp.eq.s32.totalorder %s28, 0
      %p126 = por %p124, %p125
      %p127 = scmp.ne.s32.totalorder %s115, %s116
      %p128 = scmp.eq.s32.totalorder %s29, 1
      %p129 = por %p127, %p128
      %p131 = scmp.ne.s32.totalorder %s116, %s130
      %p132 = scmp.eq.s32.totalorder %s29, 0
      %p133 = por %p131, %p132
      %s134 = ssub.s32 %s30, %s42
      %s135 = ssub.s32 %s31, %s38
      %s136 = sor.u32 %s134, %s135
      %p137 = scmp.eq.s32.totalorder %s136, 0
      %s139 = sadd.s32 %s138, 1
      %s140 = scalar_select %p137, %s138, %s139
      %p143 = pneg %p137
      %p144 = scmp.eq.s32.totalorder %s23, 1
      %p145 = por %p143, %p144
      %p146 = scmp.ne.s32.totalorder %s138, %s141
      %p147 = scmp.eq.s32.totalorder %s23, 0
      %p148 = por %p146, %p147
      %p149 = scmp.ne.s32.totalorder %s138, %s141
      %p150 = scmp.eq.s32.totalorder %s28, 1
      %p151 = por %p149, %p150
      %p152 = scmp.ne.s32.totalorder %s141, %s142
      %p153 = scmp.eq.s32.totalorder %s28, 0
      %p154 = por %p152, %p153
      %p155 = scmp.ne.s32.totalorder %s141, %s142
      %p156 = scmp.eq.s32.totalorder %s29, 1
      %p157 = por %p155, %p156
      %p159 = scmp.ne.s32.totalorder %s142, %s158
      %p160 = scmp.eq.s32.totalorder %s29, 0
      %p161 = por %p159, %p160
      %s162 = ssub.s32 %s30, %s42
      %s163 = ssub.s32 %s31, %s38
      %s164 = sor.u32 %s162, %s163
      %p165 = scmp.eq.s32.totalorder %s164, 0
      %s167 = sadd.s32 %s166, 1
      %s168 = scalar_select %p165, %s166, %s167
      %p171 = pneg %p165
      %p172 = scmp.eq.s32.totalorder %s23, 1
      %p173 = por %p171, %p172
      %p174 = scmp.ne.s32.totalorder %s166, %s169
      %p175 = scmp.eq.s32.totalorder %s23, 0
      %p176 = por %p174, %p175
      %p177 = scmp.ne.s32.totalorder %s166, %s169
      %p178 = scmp.eq.s32.totalorder %s28, 1
      %p179 = por %p177, %p178
      %p180 = scmp.ne.s32.totalorder %s169, %s170
      %p181 = scmp.eq.s32.totalorder %s28, 0
      %p182 = por %p180, %p181
      %p183 = scmp.ne.s32.totalorder %s169, %s170
      %p184 = scmp.eq.s32.totalorder %s29, 1
      %p185 = por %p183, %p184
      %p187 = scmp.ne.s32.totalorder %s170, %s186
      %p188 = scmp.eq.s32.totalorder %s29, 0
      %p189 = por %p187, %p188
      %s190 = ssub.s32 %s30, %s42
      %s191 = ssub.s32 %s31, %s38
      %s192 = sor.u32 %s190, %s191
      %p193 = scmp.eq.s32.totalorder %s192, 0
      %s195 = sadd.s32 %s194, 1
      %s196 = scalar_select %p193, %s194, %s195
      %p199 = pneg %p193
      %p200 = scmp.eq.s32.totalorder %s23, 1
      %p201 = por %p199, %p200
      %p202 = scmp.ne.s32.totalorder %s194, %s197
      %p203 = scmp.eq.s32.totalorder %s23, 0
      %p204 = por %p202, %p203
      %p205 = scmp.ne.s32.totalorder %s194, %s197
      %p206 = scmp.eq.s32.totalorder %s28, 1
      %p207 = por %p205, %p206
      %p208 = scmp.ne.s32.totalorder %s197, %s198
      %p209 = scmp.eq.s32.totalorder %s28, 0
      %p210 = por %p208, %p209
      %p211 = scmp.ne.s32.totalorder %s197, %s198
      %p212 = scmp.eq.s32.totalorder %s29, 1
      %p213 = por %p211, %p212
      %p215 = scmp.ne.s32.totalorder %s198, %s214
      %p216 = scmp.eq.s32.totalorder %s29, 0
      %p217 = por %p215, %p216
      %p218 = scmp.le.s32.totalorder 1, %s23
      %p219 = scmp.lt.s32.totalorder %s23, 3
      %p220 = pnand %p218, %p219
      %p221 = pneg %p220
      // Predicated region
      $region9: #{tpu_custom_call.1} parent=5 // pred_check
        _
      $region10: #{tpu_custom_call.1} parent=5 // pred_check_branch
        %223 = sbr.rel (%p220) target = $region12
      $region11: #{tpu_custom_call.1} parent=5 // pred_region
        %s224 = ssub.s32 %s23, 1
        // Predicated region
        $region13: #{tpu_custom_call.1} parent=11 // pred_check
          %p225 = pneg %p84
        $region14: #{tpu_custom_call.1} parent=11 // pred_check_branch
          %227 = sbr.rel (%p225) target = $region16
        $region15: #{tpu_custom_call.1} parent=11 // pred_region
          _
        $region16: #{tpu_custom_call.1} parent=11 // pred_fallthru
          _
        // Predicated region
        $region17: #{tpu_custom_call.1} parent=11 // pred_check
          %p228 = pneg %p105
        $region18: #{tpu_custom_call.1} parent=11 // pred_check_branch
          %230 = sbr.rel (%p228) target = $region20
        $region19: #{tpu_custom_call.1} parent=11 // pred_region
          _
        $region20: #{tpu_custom_call.1} parent=11 // pred_fallthru
          _
        // Predicated region
        $region21: #{tpu_custom_call.1} parent=11 // pred_check
          %p231 = pneg %p126
        $region22: #{tpu_custom_call.1} parent=11 // pred_check_branch
          %233 = sbr.rel (%p231) target = $region24
        $region23: #{tpu_custom_call.1} parent=11 // pred_region
          %s235 = ssub.s32 256, 256
          %236 = vsyncadd [#allocation6], %s235
          %s237 = sshll.u32 [#allocation5], 4
          %s238 = int_to_ptr.vmem [resolvable:$true] %s237
          %243 = dma.hbm_to_vmem [thread:$0]  %s3, 256, %s238, [#allocation6], 64, 64, 4
        $region24: #{tpu_custom_call.1} parent=11 // pred_fallthru
          _
      $region12: #{tpu_custom_call.1} parent=5 // pred_fallthru
        _
      %p244 = scmp.lt.s32.totalorder %s23, 2
      // Predicated region
      $region25: #{tpu_custom_call.1} parent=5 // pred_check
        %p245 = pneg %p244
      $region26: #{tpu_custom_call.1} parent=5 // pred_check_branch
        %247 = sbr.rel (%p245) target = $region28
      $region27: #{tpu_custom_call.1} parent=5 // pred_region
        // Predicated region
        $region29: #{tpu_custom_call.1} parent=27 // pred_check
          %p248 = pneg %p57
        $region30: #{tpu_custom_call.1} parent=27 // pred_check_branch
          %250 = sbr.rel (%p248) target = $region32
        $region31: #{tpu_custom_call.1} parent=27 // pred_region
          %s251 = sand.u32 %s47, 1
          %s252 = scalar_lea.sflag [#allocation3], %s251
          %s253 = sand.u32 %s47, 1
          %s254 = smul.addr %s253, 4
          %s255 = scalar_lea.vmem [#allocation2], %s254
          %s257 = ssub.s32 64, 64
          %258 = vsyncadd %s252, %s257
          %s259 = sadd.s32 %s31, %s30
          %s260 = smul.addr %s259, 64
          %s261 = scalar_lea.hbm %s0, %s260
          %s263 = sshll.u32 %s255, 4
          %s264 = int_to_ptr.vmem [resolvable:$true] %s263
          %266 = dma.hbm_to_vmem [thread:$0]  %s261, 64, %s264, %s252
        $region32: #{tpu_custom_call.1} parent=27 // pred_fallthru
          _
      $region28: #{tpu_custom_call.1} parent=5 // pred_fallthru
        _
      %p267 = scmp.le.s32.totalorder 1, %s23
      %p268 = scmp.lt.s32.totalorder %s23, 3
      %p269 = pnand %p267, %p268
      %p270 = pneg %p269
      // Predicated region
      $region33: #{tpu_custom_call.1} parent=5 // pred_check
        _
      $region34: #{tpu_custom_call.1} parent=5 // pred_check_branch
        %272 = sbr.rel (%p269) target = $region36
      $region35: #{tpu_custom_call.1} parent=5 // pred_region
        %s273 = ssub.s32 %s23, 1
        %s274 = sand.u32 %s50, 1
        %s275 = scalar_lea.sflag [#allocation3], %s274
        %s276 = sand.u32 %s50, 1
        %s277 = smul.addr %s276, 4
        %s278 = scalar_lea.vmem [#allocation2], %s277
        // Predicated region
        $region37: #{tpu_custom_call.1} parent=35 // pred_check
          %p279 = pneg %p63
        $region38: #{tpu_custom_call.1} parent=35 // pred_check_branch
          %281 = sbr.rel (%p279) target = $region40
        $region39: #{tpu_custom_call.1} parent=35 // pred_region
          %282 = dma.done %s275, 64
        $region40: #{tpu_custom_call.1} parent=35 // pred_fallthru
          _
        // Predicated region
        $region41: #{tpu_custom_call.1} parent=35 // pred_check
          %p283 = pneg %p126
        $region42: #{tpu_custom_call.1} parent=35 // pred_check_branch
          %285 = sbr.rel (%p283) target = $region44
        $region43: #{tpu_custom_call.1} parent=35 // pred_region
          %286 = dma.done [#allocation6], 256
        $region44: #{tpu_custom_call.1} parent=35 // pred_fallthru
          _
        %s287 = sand.u32 %s50, 1
        %s288 = scalar_lea.sflag [#allocation3], %s287
        %s289 = sand.u32 %s50, 1
        %s290 = smul.addr %s289, 4
        %s291 = scalar_lea.vmem [#allocation2], %s290
        %p292 = pneg %p63
        %p293 = pneg %p60
        %p294 = pneg %p84
        %p295 = pneg %p81
        %p296 = pneg %p105
        %p297 = pneg %p102
        %p298 = pneg %p126
        %p299 = pneg %p123
        %p300 = pneg %p154
        %p301 = pneg %p151
        %s302 = sand.u32 %s141, 1
        %s303 = scalar_lea.sflag [#allocation4], %s302
        %s304 = sand.u32 %s141, 1
        %s305 = smul.addr %s304, 4
        %s306 = scalar_lea.vmem [#allocation7], %s305
        %p307 = pneg %p182
        %p308 = pneg %p179
        %s309 = sand.u32 %s28, 1
        %s310 = scalar_lea.sflag [#allocation9], %s309
        %s311 = sand.u32 %s169, 1
        %s312 = smul.addr %s311, 4
        %s313 = scalar_lea.vmem [#allocation8], %s312
        %p314 = pneg %p210
        %p315 = pneg %p207
        %s316 = sand.u32 %s28, 1
        %s317 = scalar_lea.sflag [#allocation9], %s316
        %s318 = sand.u32 %s197, 1
        %s319 = smul.addr %s318, 4
        %s320 = scalar_lea.vmem [#allocation10], %s319
        %v322 = vld [vmem:[%s278] sm:$0xf]
        %v323 = vunpack.c.l.bf16 %v322
        %vm324 = vcmask 261120
        %v325 = vsel %vm324, %v323, 0.0
        %326 = vadd.xlane.f32.xlu0 %v325
        %v327 = vpop.xlane.xlu0 %326
        %v328 = vrcp.pop 32.0
        %v329 = vmul.f32 %v327, %v328
        %v330 = vsub.f32 %v323, %v329
        %v331 = vmul.f32 %v330, %v330
        %v332 = vsel %vm324, %v331, 0.0
        %333 = vadd.xlane.f32.xlu0 %v332
        %v334 = vpop.xlane.xlu0 %333
        %v335 = vmul.f32 %v334, %v328
        %v336 = vadd.f32 %v335, 1e-05
        %v337 = vrsqrt.pop %v336
        %v338 = vmul.f32 %v330, %v337
        %v339 = vld [vmem:[%s1] sm:$0x1]
        %v341 = vlaneseq
        %v342 = vshrl.u32 %v341, 7
        %v343 = vsub.s32 0, %v342
        %v344 = vrot.slane %v339, %v343
        %v346 = vmul.f32 %v338, %v344
        %v347 = vld [vmem:[%s2] sm:$0x1]
        %v349 = vlaneseq
        %v350 = vshrl.u32 %v349, 7
        %v351 = vsub.s32 0, %v350
        %v352 = vrot.slane %v347, %v351
        %v354 = vadd.f32 %v346, %v352
        %v355 = vpack.c.bf16 %v354, %v354
        %v356 = vld [vmem:[#allocation5] sm:$0xf]
        %v357 = vld [vmem:[#allocation5 + $0x4] sm:$0xf]
        %v358 = vld [vmem:[#allocation5 + $0x8] sm:$0xf]
        %v359 = vld [vmem:[#allocation5 + $0xc] sm:$0xf]
        %v364 = vunpack.c.l.b16 %v356
        %v365 = vunpack.c.l.b16 %v357
        %v366 = vunpack.c.l.b16 %v358
        %v367 = vunpack.c.l.b16 %v359
        %v368 = vpack.c.b16 %v365, %v364
        %v369 = vpack.c.b16 %v367, %v366
        %v373 = vsel %vm324, %v355, 0
        %375 = vmatprep.subr.bf16.mxu0 0
        %376 = vmatpush1.bf16.msra.mxu0 0
        %377 = vmatprep.subr.bf16.mxu0 0
        %378 = vmatpush1.bf16.msra.mxu0 0
        %379 = vmatprep.subr.bf16.mxu0 0
        %380 = vmatpush1.bf16.msra.mxu0 0
        %381 = vmatprep.subr.bf16.mxu0 0
        %382 = vmatpush1.bf16.msra.mxu0 0
        %383 = vmatprep.subr.bf16.mxu0 0
        %384 = vmatpush1.bf16.msra.mxu0 0
        %385 = vmatprep.subr.bf16.mxu0 0
        %386 = vmatpush1.bf16.msra.mxu0 0
        %387 = vmatprep.subr.bf16.mxu0 0
        %388 = vmatpush1.bf16.msra.mxu0 %v369
        %389 = vmatprep.subr.bf16.mxu0 0
        %390 = vmatpush1.bf16.msra.mxu0 %v368
        %391 = vmatprep.subr.bf16.mxu0 0
        %392 = vmatpush2.bf16.msra.mxu0 0
        %393 = vmatprep.subr.bf16.mxu0 0
        %394 = vmatpush2.bf16.msra.mxu0 0
        %395 = vmatprep.subr.bf16.mxu0 0
        %396 = vmatpush2.bf16.msra.mxu0 0
        %397 = vmatprep.subr.bf16.mxu0 0
        %398 = vmatpush2.bf16.msra.mxu0 0
        %399 = vmatprep.subr.bf16.mxu0 0
        %400 = vmatpush2.bf16.msra.mxu0 0
        %401 = vmatprep.subr.bf16.mxu0 0
        %402 = vmatpush2.bf16.msra.mxu0 0
        %403 = vmatprep.subr.bf16.mxu0 0
        %404 = vmatpush2.bf16.msra.mxu0 0
        %405 = vmatprep.subr.bf16.mxu0 0
        %406 = vmatpush2.bf16.msra.mxu0 0
        %407 = vmatprep.mubr.bf16.mxu0 0
        %408 = vmatmul.mubr.bf16.gmra.mxu0 %v373
        %v409 = vpop.f32.mrf.mxu0
        %v410 = vadd.f32 0.0, %v409
        %v411 = vpop.f32.mrf.mxu0
        %v412 = vpop.f32.mrf.mxu0
        %v413 = vpop.f32.mrf.mxu0
        %414 = vdwg.mxu0
        %v415 = vpack.c.bf16 %v410, %v410
        %vm416 = vcmask 257024
        %417 = vst.msk [vmem:[%s306] sm:$0xf] %vm416, %v415
        %v419 = vunpack.c.l.b16 %v415
        %v420 = vpack.c.b16 %v419, %v419
        %421 = vrot.lane.b32.xlu0 %v420, 96
        %v422 = vpop.permute.xlu0 %421
        %424 = vst.msk [vmem:[%s313] sm:$0xf] %vm416, %v422
        %425 = vrot.lane.b32.xlu0 %v420, 64
        %v426 = vpop.permute.xlu0 %425
        %428 = vst.msk [vmem:[%s320] sm:$0xf] %vm416, %v426
        %s429 = sand.u32 %s141, 1
        %s430 = scalar_lea.sflag [#allocation4], %s429
        %s431 = sand.u32 %s141, 1
        %s432 = smul.addr %s431, 4
        %s433 = scalar_lea.vmem [#allocation7], %s432
        %s434 = sand.u32 %s28, 1
        %s435 = scalar_lea.sflag [#allocation9], %s434
        %s436 = sand.u32 %s169, 1
        %s437 = smul.addr %s436, 4
        %s438 = scalar_lea.vmem [#allocation8], %s437
        %s439 = sand.u32 %s28, 1
        %s440 = scalar_lea.sflag [#allocation9], %s439
        %s441 = sand.u32 %s197, 1
        %s442 = smul.addr %s441, 4
        %s443 = scalar_lea.vmem [#allocation10], %s442
        // Predicated region
        $region45: #{tpu_custom_call.1} parent=35 // pred_check
          %p444 = pneg %p151
        $region46: #{tpu_custom_call.1} parent=35 // pred_check_branch
          %446 = sbr.rel (%p444) target = $region48
        $region47: #{tpu_custom_call.1} parent=35 // pred_region
          %s448 = ssub.s32 64, 64
          %449 = vsyncadd %s430, %s448
          %s450 = sadd.s32 %s33, %s32
          %s451 = smul.addr %s450, 64
          %s452 = scalar_lea.hbm %s4, %s451
          %s454 = sshll.u32 %s433, 4
          %s455 = int_to_ptr.vmem [resolvable:$true] %s454
          %457 = dma.vmem_to_hbm [thread:$0]  %s455, 64, %s452, %s430
        $region48: #{tpu_custom_call.1} parent=35 // pred_fallthru
          _
        // Predicated region
        $region49: #{tpu_custom_call.1} parent=35 // pred_check
          %p458 = pneg %p179
        $region50: #{tpu_custom_call.1} parent=35 // pred_check_branch
          %460 = sbr.rel (%p458) target = $region52
        $region51: #{tpu_custom_call.1} parent=35 // pred_region
          %s462 = ssub.s32 64, 64
          %463 = vsyncadd %s435, %s462
          %s464 = sadd.s32 %s33, %s32
          %s465 = smul.addr %s464, 64
          %s466 = scalar_lea.hbm %s5, %s465
          %s468 = sshll.u32 %s438, 4
          %s469 = int_to_ptr.vmem [resolvable:$true] %s468
          %471 = dma.vmem_to_hbm [thread:$0]  %s469, 64, %s466, %s435
        $region52: #{tpu_custom_call.1} parent=35 // pred_fallthru
          _
        // Predicated region
        $region53: #{tpu_custom_call.1} parent=35 // pred_check
          %p472 = pneg %p207
        $region54: #{tpu_custom_call.1} parent=35 // pred_check_branch
          %474 = sbr.rel (%p472) target = $region56
        $region55: #{tpu_custom_call.1} parent=35 // pred_region
          %s476 = ssub.s32 64, 64
          %477 = vsyncadd %s440, %s476
          %s478 = sadd.s32 %s33, %s32
          %s479 = smul.addr %s478, 64
          %s480 = scalar_lea.hbm %s6, %s479
          %s482 = sshll.u32 %s443, 4
          %s483 = int_to_ptr.vmem [resolvable:$true] %s482
          %485 = dma.vmem_to_hbm [thread:$0]  %s483, 64, %s480, %s440
        $region56: #{tpu_custom_call.1} parent=35 // pred_fallthru
          _
      $region36: #{tpu_custom_call.1} parent=5 // pred_fallthru
        _
      %p486 = scmp.le.s32.totalorder 2, %s23
      // Predicated region
      $region57: #{tpu_custom_call.1} parent=5 // pred_check
        %p487 = pneg %p486
      $region58: #{tpu_custom_call.1} parent=5 // pred_check_branch
        %489 = sbr.rel (%p487) target = $region60
      $region59: #{tpu_custom_call.1} parent=5 // pred_region
        %s490 = ssub.s32 %s23, 2
        // Predicated region
        $region61: #{tpu_custom_call.1} parent=59 // pred_check
          %p491 = pneg %p157
        $region62: #{tpu_custom_call.1} parent=59 // pred_check_branch
          %493 = sbr.rel (%p491) target = $region64
        $region63: #{tpu_custom_call.1} parent=59 // pred_region
          %s494 = sand.u32 %s142, 1
          %s495 = scalar_lea.sflag [#allocation4], %s494
          %s496 = sand.u32 %s142, 1
          %s497 = smul.addr %s496, 4
          %s498 = scalar_lea.vmem [#allocation7], %s497
          %499 = dma.done %s495, 64
        $region64: #{tpu_custom_call.1} parent=59 // pred_fallthru
          _
        // Predicated region
        $region65: #{tpu_custom_call.1} parent=59 // pred_check
          %p500 = pneg %p185
        $region66: #{tpu_custom_call.1} parent=59 // pred_check_branch
          %502 = sbr.rel (%p500) target = $region68
        $region67: #{tpu_custom_call.1} parent=59 // pred_region
          %s503 = sand.u32 %s29, 1
          %s504 = scalar_lea.sflag [#allocation9], %s503
          %s505 = sand.u32 %s170, 1
          %s506 = smul.addr %s505, 4
          %s507 = scalar_lea.vmem [#allocation8], %s506
          %508 = dma.done %s504, 64
        $region68: #{tpu_custom_call.1} parent=59 // pred_fallthru
          _
        // Predicated region
        $region69: #{tpu_custom_call.1} parent=59 // pred_check
          %p509 = pneg %p213
        $region70: #{tpu_custom_call.1} parent=59 // pred_check_branch
          %511 = sbr.rel (%p509) target = $region72
        $region71: #{tpu_custom_call.1} parent=59 // pred_region
          %s512 = sand.u32 %s29, 1
          %s513 = scalar_lea.sflag [#allocation9], %s512
          %s514 = sand.u32 %s198, 1
          %s515 = smul.addr %s514, 4
          %s516 = scalar_lea.vmem [#allocation10], %s515
          %517 = dma.done %s513, 64
        $region72: #{tpu_custom_call.1} parent=59 // pred_fallthru
          _
      $region60: #{tpu_custom_call.1} parent=5 // pred_fallthru
        _
    $region6: #{tpu_custom_call.1} parent=1 // loop_footer
      %s27 = sadd.s32 1, %s23
    $region7: #{tpu_custom_call.1} parent=1 // loop_footer_branch
      %22 = sbr.rel target = $region3
    $region8: #{tpu_custom_call.1} parent=1 // loop_exit
      _
    %518 = vsyncpa [#allocation3], 1
    %s519 = scalar_lea.sflag [#allocation3], 1
    %520 = vsyncpa %s519, 1
    %521 = vsyncpa [#allocation6], 1
    %522 = vsyncpa [#allocation4], 1
    %s523 = scalar_lea.sflag [#allocation4], 1
    %524 = vsyncpa %s523, 1
    %525 = vsyncpa [#allocation9], 1
    %s526 = scalar_lea.sflag [#allocation9], 1
    %527 = vsyncpa %s526, 1

</llo_original>
